<compile_context>
chip_gen: v5e
topology: v5e:2x2
jax: 0.10.0
libtpu: 0.0.40
codegen_flags: <defaults>
</compile_context>

<pallas_src>
import functools

import jax
import jax.numpy as jnp
import numpy as np
from jax.experimental import pallas as pl
from jax.experimental.pallas import tpu as pltpu

EPS = 1e-5


def _conv1x1_batched(x, w):
    """x: (N*C_in, TILE_P), w: (C_out, C_in) -> list of N per-batch (C_out, TILE_P).

    1x1 conv as C_in VPU broadcast-FMAs per batch sample (static unroll, tiny N/C).
    Conv bias intentionally omitted: cancelled exactly by training-mode BN.
    """
    nc_in = x.shape[0]
    c_out, c_in = w.shape
    n = nc_in // c_in
    ys = []
    for b in range(n):
        xb = x[b * c_in:(b + 1) * c_in, :]          # (C_in, TILE_P) static slice
        yb = w[:, 0:1] * xb[0:1, :]                 # (C_out,1)*(1,TILE_P) broadcast-FMA
        for c in range(1, c_in):
            yb = yb + w[:, c:c + 1] * xb[c:c + 1, :]
        ys.append(yb)
    return ys


def _stats_kernel(x_ref, p_ref, ss_ref, s1_ref, s2_ref, *, inv_count):
    # x_ref: (N*C_in, TILE_P) f32
    # p_ref: (C_out, C_in+2) f32, columns = [w_0 .. w_{C_in-1} | gamma | beta]
    # ss_ref: (C_out, 2) f32 output = [scale2 | shift2] (0.5 sigmoid pre-scale folded in)
    # s1_ref / s2_ref: (C_out, 1) VMEM accumulators (persist across grid steps)
    t = pl.program_id(0)

    @pl.when(t == 0)
    def _():
        s1_ref[...] = jnp.zeros_like(s1_ref)
        s2_ref[...] = jnp.zeros_like(s2_ref)

    p = p_ref[...]
    c_in = p.shape[1] - 2
    w = p[:, :c_in]

    ys = _conv1x1_batched(x_ref[...], w)
    # Reduce over the batch FIRST (cheap VPU tile adds), then ONE XLU lane-reduce.
    ysum = ys[0]
    ysqsum = ys[0] * ys[0]
    for yb in ys[1:]:
        ysum = ysum + yb
        ysqsum = ysqsum + yb * yb
    s1_ref[...] += jnp.sum(ysum, axis=1, keepdims=True)     # (C_out, 1)
    s2_ref[...] += jnp.sum(ysqsum, axis=1, keepdims=True)   # (C_out, 1)

    @pl.when(t == pl.num_programs(0) - 1)
    def _():
        mean = s1_ref[...] * inv_count
        # one-pass variance is cancellation-prone: clamp at 0 before adding EPS.
        var = jnp.maximum(s2_ref[...] * inv_count - mean * mean, 0.0)
        gamma = p[:, c_in:c_in + 1]
        beta = p[:, c_in + 1:c_in + 2]
        scale = gamma * jax.lax.rsqrt(var + EPS)
        # Fold the 0.5 of sigmoid(z) = 0.5*tanh(0.5*z)+0.5 into the affine (free here,
        # saves a full-width VPU pass in the apply kernel).
        scale2 = 0.5 * scale
        shift2 = 0.5 * (beta - mean * scale)
        ss_ref[...] = jnp.concatenate([scale2, shift2], axis=1)   # (C_out, 2)


def _apply_kernel(x_ref, p_ref, ss_ref, o_ref):
    # x_ref: (N*C_in, TILE_P); p_ref: (C_out, C_in+2); ss_ref: (C_out, 2)
    # o_ref: (N*C_out, TILE_P)
    p = p_ref[...]
    c_out = p.shape[0]
    c_in = p.shape[1] - 2
    w = p[:, :c_in]
    ss = ss_ref[...]
    scale2 = ss[:, 0:1]        # (C_out, 1), 0.5 sigmoid pre-scale already folded in
    shift2 = ss[:, 1:2]

    ys = _conv1x1_batched(x_ref[...], w)     # conv recomputed: 2 FMAs/pixel, VPU has slack
    for b, yb in enumerate(ys):
        z = yb * scale2 + shift2
        # sigmoid via one EUP tanh (no VALU divide)
        o_ref[b * c_out:(b + 1) * c_out, :] = 0.5 * jnp.tanh(z) + 0.5


def pack_params(conv2_w, conv2_b, bn_gamma, bn_beta):
    """Pack the single (C_out, C_in+2) parameter tile ONCE at weight-creation time.

    conv2_b is dropped: training-mode BatchNorm subtracts the batch mean, so a
    per-channel constant bias cancels exactly.
    """
    del conv2_b
    c_out, c_in = conv2_w.shape[0], conv2_w.shape[1]
    w_mat = conv2_w.reshape(c_out, c_in)
    # bn has 2 features; tile its affine params to the conv2 output channels.
    reps = c_out // bn_gamma.shape[0]
    gamma = jnp.tile(bn_gamma, reps).reshape(c_out, 1)
    beta = jnp.tile(bn_beta, reps).reshape(c_out, 1)
    return jnp.concatenate([w_mat, gamma, beta], axis=1)


def _pick_tile(hw):
    # Largest pixel tile that divides HW, is a multiple of 128, capped at 2048 so the
    # double-buffered (x + out) blocks stay far under scoped VMEM on every generation
    # (v5e 16 MiB, v6e/v7x 32 MiB scoped default, v7x 64 MiB physical).
    for t in (2048, 1024, 512, 256, 128):
        if hw % t == 0:
            return t
    return hw  # tiny / ragged case: single full-width tile


@jax.jit
def model_forward(x_nchw, params):
    """x_nchw: (N, C_in, H, W) f32, params from pack_params(). Returns (N, C_out, H, W)."""
    n, c_in, h, w = x_nchw.shape
    c_out = params.shape[0]
    hw = h * w
    tile_p = _pick_tile(hw)
    num_tiles = hw // tile_p

    # Pure reshapes only (NCHW-contiguous): sublane-dense (N*C, HW) layouts, no transposes.
    x2 = x_nchw.reshape(n * c_in, hw)

    def _rpad(r):  # sublane padding of a block's second-minor dim
        return ((r + 7) // 8) * 8

    block_bytes = (_rpad(n * c_in) + _rpad(n * c_out)) * tile_p * 4
    vmem_limit = int(min(max(6 * block_bytes + (4 << 20), 8 << 20), 32 << 20))

    inv_count = 1.0 / float(n * hw)

    # Pass 1: per-channel sum / sum-of-squares over an "arbitrary" pixel grid axis;
    # finalize emits folded BN(+sigmoid) scale/shift.  No y round-trip through HBM.
    ss = pl.pallas_call(
        functools.partial(_stats_kernel, inv_count=inv_count),
        out_shape=jax.ShapeDtypeStruct((c_out, 2), jnp.float32),
        grid_spec=pltpu.PrefetchScalarGridSpec(
            num_scalar_prefetch=0,
            grid=(num_tiles,),
            in_specs=[pl.BlockSpec((n * c_in, tile_p), lambda t: (0, t)),
                      pl.BlockSpec((c_out, c_in + 2), lambda t: (0, 0))],
            out_specs=pl.BlockSpec((c_out, 2), lambda t: (0, 0)),
            scratch_shapes=[pltpu.VMEM((c_out, 1), jnp.float32),
                            pltpu.VMEM((c_out, 1), jnp.float32)]),
        compiler_params=pltpu.CompilerParams(
            dimension_semantics=("arbitrary",), vmem_limit_bytes=vmem_limit),
    )(x2, params)

    # Pass 2: recompute the 2-FMA conv, normalize, sigmoid. Pixel axis is "parallel"
    # so v7x's two TensorCores split it.
    out2 = pl.pallas_call(
        _apply_kernel,
        out_shape=jax.ShapeDtypeStruct((n * c_out, hw), jnp.float32),
        grid_spec=pltpu.PrefetchScalarGridSpec(
            num_scalar_prefetch=0,
            grid=(num_tiles,),
            in_specs=[pl.BlockSpec((n * c_in, tile_p), lambda t: (0, t)),
                      pl.BlockSpec((c_out, c_in + 2), lambda t: (0, 0)),
                      pl.BlockSpec((c_out, 2), lambda t: (0, 0))],
            out_specs=pl.BlockSpec((n * c_out, tile_p), lambda t: (0, t))),
        compiler_params=pltpu.CompilerParams(
            dimension_semantics=("parallel",), vmem_limit_bytes=vmem_limit),
    )(x2, params, ss)

    return out2.reshape(n, c_out, h, w)


def _reference(x_nchw, conv2_w, conv2_b, bn_gamma, bn_beta):
    c_out, c_in = conv2_w.shape[0], conv2_w.shape[1]
    w2 = conv2_w.reshape(c_out, c_in)
    # exact f32 conv (elementwise, avoids MXU default-precision in the reference)
    y = jnp.sum(w2[None, :, :, None, None] * x_nchw[:, None, :, :, :], axis=2)
    y = y + conv2_b[None, :, None, None]
    mean = jnp.mean(y, axis=(0, 2, 3), keepdims=True)
    var = jnp.var(y, axis=(0, 2, 3), keepdims=True)
    reps = c_out // bn_gamma.shape[0]
    g = jnp.tile(bn_gamma, reps)[None, :, None, None]
    b = jnp.tile(bn_beta, reps)[None, :, None, None]
    z = g * (y - mean) / jnp.sqrt(var + EPS) + b
    return jax.nn.sigmoid(z)


if __name__ == "__main__":
    key = jax.random.PRNGKey(0)
    k_x, k_w1, k_b1, k_w2, k_b2 = jax.random.split(key, 5)

    # Small shapes consistent with the module: N=2, C_in=2, H=W=16, C_out=4.
    N, C_IN, H, W = 2, 2, 16, 16
    C_OUT = 4

    x1 = jax.random.normal(k_x, (N, C_IN, H, W), dtype=jnp.float32)

    # conv1 params initialized for completeness but unused (dead code path in the module).
    conv1_w = jax.random.normal(k_w1, (C_OUT, C_IN, 1, 1), dtype=jnp.float32) * 0.1
    conv1_b = jax.random.normal(k_b1, (C_OUT,), dtype=jnp.float32) * 0.1
    conv2_w = jax.random.normal(k_w2, (C_OUT, C_IN, 1, 1), dtype=jnp.float32) * 0.1
    conv2_b = jax.random.normal(k_b2, (C_OUT,), dtype=jnp.float32) * 0.1
    bn_gamma = jnp.ones((2,), dtype=jnp.float32)   # BatchNorm2d default init
    bn_beta = jnp.zeros((2,), dtype=jnp.float32)

    # Parameter packing hoisted out of the per-call path (done once).
    params = pack_params(conv2_w, conv2_b, bn_gamma, bn_beta)

    v4 = model_forward(x1, params)
    v4 = jax.block_until_ready(v4)

    ref = _reference(x1, conv2_w, conv2_b, bn_gamma, bn_beta)
    assert v4.shape == (N, C_OUT, H, W)
    assert np.allclose(np.asarray(v4), np.asarray(ref), atol=2e-5, rtol=2e-5)

    print("KERNEL_OK")
</pallas_src>

<mosaic_0001>
module attributes {stable_mosaic.version = 11 : i64} {
  func.func @_apply_kernel(%arg0: i32, %arg1: memref<4x256xf32, #tpu.memory_space<vmem>>, %arg2: memref<4x4xf32, #tpu.memory_space<vmem>>, %arg3: memref<4x2xf32, #tpu.memory_space<vmem>>, %arg4: memref<8x256xf32, #tpu.memory_space<vmem>>) attributes {dimension_semantics = [#tpu.dimension_semantics<parallel>], iteration_bounds = array<i64: 1>, scalar_prefetch = 0 : i64, scratch_operands = 0 : i64, tpu.core_type = #tpu.core_type<tc>, window_params = [{transform_indices = @transform_0, window_bounds = array<i64: 4, 256>}, {pipeline_mode = #tpu.pipeline_mode<synchronous>, transform_indices = @transform_1, window_bounds = array<i64: 4, 4>}, {pipeline_mode = #tpu.pipeline_mode<synchronous>, transform_indices = @transform_2, window_bounds = array<i64: 4, 2>}, {transform_indices = @transform_3, window_bounds = array<i64: 8, 256>}]} {
    %c0 = arith.constant 0 : index
    %c0_0 = arith.constant 0 : index
    %0 = vector.load %arg2[%c0, %c0_0] : memref<4x4xf32, #tpu.memory_space<vmem>>, vector<4x4xf32>
    %1 = vector.extract_strided_slice %0 {offsets = [0, 0], sizes = [4, 2], strides = [1, 1]} : vector<4x4xf32> to vector<4x2xf32>
    %c0_1 = arith.constant 0 : index
    %c0_2 = arith.constant 0 : index
    %2 = vector.load %arg3[%c0_1, %c0_2] : memref<4x2xf32, #tpu.memory_space<vmem>>, vector<4x2xf32>
    %3 = vector.extract_strided_slice %2 {offsets = [0, 0], sizes = [4, 1], strides = [1, 1]} : vector<4x2xf32> to vector<4x1xf32>
    %4 = vector.extract_strided_slice %2 {offsets = [0, 1], sizes = [4, 1], strides = [1, 1]} : vector<4x2xf32> to vector<4x1xf32>
    %c0_3 = arith.constant 0 : index
    %c0_4 = arith.constant 0 : index
    %5 = vector.load %arg1[%c0_3, %c0_4] : memref<4x256xf32, #tpu.memory_space<vmem>>, vector<4x256xf32>
    %6 = vector.extract_strided_slice %5 {offsets = [0, 0], sizes = [2, 256], strides = [1, 1]} : vector<4x256xf32> to vector<2x256xf32>
    %7 = vector.extract_strided_slice %1 {offsets = [0, 0], sizes = [4, 1], strides = [1, 1]} : vector<4x2xf32> to vector<4x1xf32>
    %8 = vector.extract_strided_slice %6 {offsets = [0, 0], sizes = [1, 256], strides = [1, 1]} : vector<2x256xf32> to vector<1x256xf32>
    %9 = vector.broadcast %7 : vector<4x1xf32> to vector<4x256xf32>
    %10 = vector.broadcast %8 : vector<1x256xf32> to vector<4x256xf32>
    %11 = arith.mulf %9, %10 : vector<4x256xf32>
    %12 = vector.extract_strided_slice %1 {offsets = [0, 1], sizes = [4, 1], strides = [1, 1]} : vector<4x2xf32> to vector<4x1xf32>
    %13 = vector.extract_strided_slice %6 {offsets = [1, 0], sizes = [1, 256], strides = [1, 1]} : vector<2x256xf32> to vector<1x256xf32>
    %14 = vector.broadcast %12 : vector<4x1xf32> to vector<4x256xf32>
    %15 = vector.broadcast %13 : vector<1x256xf32> to vector<4x256xf32>
    %16 = arith.mulf %14, %15 : vector<4x256xf32>
    %17 = arith.addf %11, %16 : vector<4x256xf32>
    %18 = vector.extract_strided_slice %5 {offsets = [2, 0], sizes = [2, 256], strides = [1, 1]} : vector<4x256xf32> to vector<2x256xf32>
    %19 = vector.extract_strided_slice %1 {offsets = [0, 0], sizes = [4, 1], strides = [1, 1]} : vector<4x2xf32> to vector<4x1xf32>
    %20 = vector.extract_strided_slice %18 {offsets = [0, 0], sizes = [1, 256], strides = [1, 1]} : vector<2x256xf32> to vector<1x256xf32>
    %21 = vector.broadcast %19 : vector<4x1xf32> to vector<4x256xf32>
    %22 = vector.broadcast %20 : vector<1x256xf32> to vector<4x256xf32>
    %23 = arith.mulf %21, %22 : vector<4x256xf32>
    %24 = vector.extract_strided_slice %1 {offsets = [0, 1], sizes = [4, 1], strides = [1, 1]} : vector<4x2xf32> to vector<4x1xf32>
    %25 = vector.extract_strided_slice %18 {offsets = [1, 0], sizes = [1, 256], strides = [1, 1]} : vector<2x256xf32> to vector<1x256xf32>
    %26 = vector.broadcast %24 : vector<4x1xf32> to vector<4x256xf32>
    %27 = vector.broadcast %25 : vector<1x256xf32> to vector<4x256xf32>
    %28 = arith.mulf %26, %27 : vector<4x256xf32>
    %29 = arith.addf %23, %28 : vector<4x256xf32>
    %30 = vector.broadcast %3 : vector<4x1xf32> to vector<4x256xf32>
    %31 = arith.mulf %17, %30 : vector<4x256xf32>
    %32 = vector.broadcast %4 : vector<4x1xf32> to vector<4x256xf32>
    %33 = arith.addf %31, %32 : vector<4x256xf32>
    %34 = math.tanh %33 : vector<4x256xf32>
    %cst = arith.constant 5.000000e-01 : f32
    %35 = vector.broadcast %cst : f32 to vector<4x256xf32>
    %36 = arith.mulf %35, %34 : vector<4x256xf32>
    %cst_5 = arith.constant 5.000000e-01 : f32
    %37 = vector.broadcast %cst_5 : f32 to vector<4x256xf32>
    %38 = arith.addf %36, %37 : vector<4x256xf32>
    %c0_6 = arith.constant 0 : index
    %c0_7 = arith.constant 0 : index
    %39 = vector.load %arg4[%c0_6, %c0_7] : memref<8x256xf32, #tpu.memory_space<vmem>>, vector<4x256xf32>
    tpu.vector_store %arg4[%c0_6, %c0_7], %38 {strides = array<i32>} : memref<8x256xf32, #tpu.memory_space<vmem>>, vector<4x256xf32>,
    %40 = vector.broadcast %3 : vector<4x1xf32> to vector<4x256xf32>
    %41 = arith.mulf %29, %40 : vector<4x256xf32>
    %42 = vector.broadcast %4 : vector<4x1xf32> to vector<4x256xf32>
    %43 = arith.addf %41, %42 : vector<4x256xf32>
    %44 = math.tanh %43 : vector<4x256xf32>
    %cst_8 = arith.constant 5.000000e-01 : f32
    %45 = vector.broadcast %cst_8 : f32 to vector<4x256xf32>
    %46 = arith.mulf %45, %44 : vector<4x256xf32>
    %cst_9 = arith.constant 5.000000e-01 : f32
    %47 = vector.broadcast %cst_9 : f32 to vector<4x256xf32>
    %48 = arith.addf %46, %47 : vector<4x256xf32>
    %c4 = arith.constant 4 : index
    %c0_10 = arith.constant 0 : index
    %49 = vector.load %arg4[%c4, %c0_10] : memref<8x256xf32, #tpu.memory_space<vmem>>, vector<4x256xf32>
    tpu.vector_store %arg4[%c4, %c0_10], %48 {strides = array<i32>} : memref<8x256xf32, #tpu.memory_space<vmem>>, vector<4x256xf32>,
    return
  }
  func.func @transform_0(%arg0: i32) -> (i32, i32) {
    %c0_i32 = arith.constant 0 : i32
    %c0_i32_0 = arith.constant 0 : i32
    return %c0_i32, %arg0 : i32, i32
  }
  func.func @transform_1(%arg0: i32) -> (i32, i32) {
    %c0_i32 = arith.constant 0 : i32
    %c0_i32_0 = arith.constant 0 : i32
    %c0_i32_1 = arith.constant 0 : i32
    return %c0_i32, %c0_i32_0 : i32, i32
  }
  func.func @transform_2(%arg0: i32) -> (i32, i32) {
    %c0_i32 = arith.constant 0 : i32
    %c0_i32_0 = arith.constant 0 : i32
    %c0_i32_1 = arith.constant 0 : i32
    return %c0_i32, %c0_i32_0 : i32, i32
  }
  func.func @transform_3(%arg0: i32) -> (i32, i32) {
    %c0_i32 = arith.constant 0 : i32
    %c0_i32_0 = arith.constant 0 : i32
    return %c0_i32, %arg0 : i32, i32
  }
}

module attributes {stable_mosaic.version = 11 : i64} {
  func.func @_stats_kernel(%arg0: i32, %arg1: memref<4x256xf32, #tpu.memory_space<vmem>>, %arg2: memref<4x4xf32, #tpu.memory_space<vmem>>, %arg3: memref<4x2xf32, #tpu.memory_space<vmem>>, %arg4: memref<4x1xf32, #tpu.memory_space<vmem>>, %arg5: memref<4x1xf32, #tpu.memory_space<vmem>>) attributes {dimension_semantics = [#tpu.dimension_semantics<arbitrary>], iteration_bounds = array<i64: 1>, scalar_prefetch = 0 : i64, scratch_operands = 2 : i64, tpu.core_type = #tpu.core_type<tc>, window_params = [{transform_indices = @transform_0, window_bounds = array<i64: 4, 256>}, {pipeline_mode = #tpu.pipeline_mode<synchronous>, transform_indices = @transform_1, window_bounds = array<i64: 4, 4>}, {pipeline_mode = #tpu.pipeline_mode<synchronous>, transform_indices = @transform_2, window_bounds = array<i64: 4, 2>}]} {
    %c0_i32 = arith.constant 0 : i32
    %0 = arith.cmpi eq, %arg0, %c0_i32 : i32
    %1 = arith.extui %0 : i1 to i32
    %c0_i32_0 = arith.constant 0 : i32
    %2 = arith.cmpi ne, %1, %c0_i32_0 : i32
    scf.if %2 {
      %cst_15 = arith.constant 0.000000e+00 : f32
      %47 = vector.broadcast %cst_15 : f32 to vector<4x1xf32>
      %c0_16 = arith.constant 0 : index
      %c0_17 = arith.constant 0 : index
      %48 = vector.load %arg4[%c0_16, %c0_17] : memref<4x1xf32, #tpu.memory_space<vmem>>, vector<4x1xf32>
      tpu.vector_store %arg4[%c0_16, %c0_17], %47 {strides = array<i32>} : memref<4x1xf32, #tpu.memory_space<vmem>>, vector<4x1xf32>,
      %cst_18 = arith.constant 0.000000e+00 : f32
      %49 = vector.broadcast %cst_18 : f32 to vector<4x1xf32>
      %c0_19 = arith.constant 0 : index
      %c0_20 = arith.constant 0 : index
      %50 = vector.load %arg5[%c0_19, %c0_20] : memref<4x1xf32, #tpu.memory_space<vmem>>, vector<4x1xf32>
      tpu.vector_store %arg5[%c0_19, %c0_20], %49 {strides = array<i32>} : memref<4x1xf32, #tpu.memory_space<vmem>>, vector<4x1xf32>,
    } else {
    }
    %c0 = arith.constant 0 : index
    %c0_1 = arith.constant 0 : index
    %3 = vector.load %arg2[%c0, %c0_1] : memref<4x4xf32, #tpu.memory_space<vmem>>, vector<4x4xf32>
    %4 = vector.extract_strided_slice %3 {offsets = [0, 0], sizes = [4, 2], strides = [1, 1]} : vector<4x4xf32> to vector<4x2xf32>
    %c0_2 = arith.constant 0 : index
    %c0_3 = arith.constant 0 : index
    %5 = vector.load %arg1[%c0_2, %c0_3] : memref<4x256xf32, #tpu.memory_space<vmem>>, vector<4x256xf32>
    %6 = vector.extract_strided_slice %5 {offsets = [0, 0], sizes = [2, 256], strides = [1, 1]} : vector<4x256xf32> to vector<2x256xf32>
    %7 = vector.extract_strided_slice %4 {offsets = [0, 0], sizes = [4, 1], strides = [1, 1]} : vector<4x2xf32> to vector<4x1xf32>
    %8 = vector.extract_strided_slice %6 {offsets = [0, 0], sizes = [1, 256], strides = [1, 1]} : vector<2x256xf32> to vector<1x256xf32>
    %9 = vector.broadcast %7 : vector<4x1xf32> to vector<4x256xf32>
    %10 = vector.broadcast %8 : vector<1x256xf32> to vector<4x256xf32>
    %11 = arith.mulf %9, %10 : vector<4x256xf32>
    %12 = vector.extract_strided_slice %4 {offsets = [0, 1], sizes = [4, 1], strides = [1, 1]} : vector<4x2xf32> to vector<4x1xf32>
    %13 = vector.extract_strided_slice %6 {offsets = [1, 0], sizes = [1, 256], strides = [1, 1]} : vector<2x256xf32> to vector<1x256xf32>
    %14 = vector.broadcast %12 : vector<4x1xf32> to vector<4x256xf32>
    %15 = vector.broadcast %13 : vector<1x256xf32> to vector<4x256xf32>
    %16 = arith.mulf %14, %15 : vector<4x256xf32>
    %17 = arith.addf %11, %16 : vector<4x256xf32>
    %18 = vector.extract_strided_slice %5 {offsets = [2, 0], sizes = [2, 256], strides = [1, 1]} : vector<4x256xf32> to vector<2x256xf32>
    %19 = vector.extract_strided_slice %4 {offsets = [0, 0], sizes = [4, 1], strides = [1, 1]} : vector<4x2xf32> to vector<4x1xf32>
    %20 = vector.extract_strided_slice %18 {offsets = [0, 0], sizes = [1, 256], strides = [1, 1]} : vector<2x256xf32> to vector<1x256xf32>
    %21 = vector.broadcast %19 : vector<4x1xf32> to vector<4x256xf32>
    %22 = vector.broadcast %20 : vector<1x256xf32> to vector<4x256xf32>
    %23 = arith.mulf %21, %22 : vector<4x256xf32>
    %24 = vector.extract_strided_slice %4 {offsets = [0, 1], sizes = [4, 1], strides = [1, 1]} : vector<4x2xf32> to vector<4x1xf32>
    %25 = vector.extract_strided_slice %18 {offsets = [1, 0], sizes = [1, 256], strides = [1, 1]} : vector<2x256xf32> to vector<1x256xf32>
    %26 = vector.broadcast %24 : vector<4x1xf32> to vector<4x256xf32>
    %27 = vector.broadcast %25 : vector<1x256xf32> to vector<4x256xf32>
    %28 = arith.mulf %26, %27 : vector<4x256xf32>
    %29 = arith.addf %23, %28 : vector<4x256xf32>
    %30 = arith.mulf %17, %17 : vector<4x256xf32>
    %31 = arith.addf %17, %29 : vector<4x256xf32>
    %32 = arith.mulf %29, %29 : vector<4x256xf32>
    %33 = arith.addf %30, %32 : vector<4x256xf32>
    %c0_4 = arith.constant 0 : index
    %c0_5 = arith.constant 0 : index
    %34 = vector.load %arg4[%c0_4, %c0_5] : memref<4x1xf32, #tpu.memory_space<vmem>>, vector<4x1xf32>
    %cst = arith.constant dense<0.000000e+00> : vector<4xf32>
    %35 = vector.multi_reduction <add>, %31, %cst [1] : vector<4x256xf32> to vector<4xf32>
    %36 = vector.shape_cast %35 : vector<4xf32> to vector<4x1xf32>
    %37 = arith.addf %34, %36 : vector<4x1xf32>
    %c0_6 = arith.constant 0 : index
    %c0_7 = arith.constant 0 : index
    %38 = vector.load %arg4[%c0_6, %c0_7] : memref<4x1xf32, #tpu.memory_space<vmem>>, vector<4x1xf32>
    tpu.vector_store %arg4[%c0_6, %c0_7], %37 {strides = array<i32>} : memref<4x1xf32, #tpu.memory_space<vmem>>, vector<4x1xf32>,
    %c0_8 = arith.constant 0 : index
    %c0_9 = arith.constant 0 : index
    %39 = vector.load %arg5[%c0_8, %c0_9] : memref<4x1xf32, #tpu.memory_space<vmem>>, vector<4x1xf32>
    %cst_10 = arith.constant dense<0.000000e+00> : vector<4xf32>
    %40 = vector.multi_reduction <add>, %33, %cst_10 [1] : vector<4x256xf32> to vector<4xf32>
    %41 = vector.shape_cast %40 : vector<4xf32> to vector<4x1xf32>
    %42 = arith.addf %39, %41 : vector<4x1xf32>
    %c0_11 = arith.constant 0 : index
    %c0_12 = arith.constant 0 : index
    %43 = vector.load %arg5[%c0_11, %c0_12] : memref<4x1xf32, #tpu.memory_space<vmem>>, vector<4x1xf32>
    tpu.vector_store %arg5[%c0_11, %c0_12], %42 {strides = array<i32>} : memref<4x1xf32, #tpu.memory_space<vmem>>, vector<4x1xf32>,
    %c0_i32_13 = arith.constant 0 : i32
    %44 = arith.cmpi eq, %arg0, %c0_i32_13 : i32
    %45 = arith.extui %44 : i1 to i32
    %c0_i32_14 = arith.constant 0 : i32
    %46 = arith.cmpi ne, %45, %c0_i32_14 : i32
    scf.if %46 {
      %c0_15 = arith.constant 0 : index
      %c0_16 = arith.constant 0 : index
      %47 = vector.load %arg4[%c0_15, %c0_16] : memref<4x1xf32, #tpu.memory_space<vmem>>, vector<4x1xf32>
      %cst_17 = arith.constant 0.001953125 : f32
      %48 = vector.broadcast %cst_17 : f32 to vector<4x1xf32>
      %49 = arith.mulf %47, %48 : vector<4x1xf32>
      %c0_18 = arith.constant 0 : index
      %c0_19 = arith.constant 0 : index
      %50 = vector.load %arg5[%c0_18, %c0_19] : memref<4x1xf32, #tpu.memory_space<vmem>>, vector<4x1xf32>
      %cst_20 = arith.constant 0.001953125 : f32
      %51 = vector.broadcast %cst_20 : f32 to vector<4x1xf32>
      %52 = arith.mulf %50, %51 : vector<4x1xf32>
      %53 = arith.mulf %49, %49 : vector<4x1xf32>
      %54 = arith.subf %52, %53 : vector<4x1xf32>
      %cst_21 = arith.constant 0.000000e+00 : f32
      %55 = vector.broadcast %cst_21 : f32 to vector<4x1xf32>
      %56 = arith.maximumf %54, %55 : vector<4x1xf32>
      %57 = vector.extract_strided_slice %3 {offsets = [0, 2], sizes = [4, 1], strides = [1, 1]} : vector<4x4xf32> to vector<4x1xf32>
      %58 = vector.extract_strided_slice %3 {offsets = [0, 3], sizes = [4, 1], strides = [1, 1]} : vector<4x4xf32> to vector<4x1xf32>
      %cst_22 = arith.constant 9.99999974E-6 : f32
      %59 = vector.broadcast %cst_22 : f32 to vector<4x1xf32>
      %60 = arith.addf %56, %59 : vector<4x1xf32>
      %61 = math.rsqrt %60 : vector<4x1xf32>
      %62 = arith.mulf %57, %61 : vector<4x1xf32>
      %cst_23 = arith.constant 5.000000e-01 : f32
      %63 = vector.broadcast %cst_23 : f32 to vector<4x1xf32>
      %64 = arith.mulf %63, %62 : vector<4x1xf32>
      %65 = arith.mulf %49, %62 : vector<4x1xf32>
      %66 = arith.subf %58, %65 : vector<4x1xf32>
      %cst_24 = arith.constant 5.000000e-01 : f32
      %67 = vector.broadcast %cst_24 : f32 to vector<4x1xf32>
      %68 = arith.mulf %67, %66 : vector<4x1xf32>
      %69 = tpu.concatenate %64, %68 in 1 : vector<4x1xf32>, vector<4x1xf32> -> vector<4x2xf32>
      %c0_25 = arith.constant 0 : index
      %c0_26 = arith.constant 0 : index
      %70 = vector.load %arg3[%c0_25, %c0_26] : memref<4x2xf32, #tpu.memory_space<vmem>>, vector<4x2xf32>
      tpu.vector_store %arg3[%c0_25, %c0_26], %69 {strides = array<i32>} : memref<4x2xf32, #tpu.memory_space<vmem>>, vector<4x2xf32>,
    } else {
    }
    return
  }
  func.func @transform_0(%arg0: i32) -> (i32, i32) {
    %c0_i32 = arith.constant 0 : i32
    %c0_i32_0 = arith.constant 0 : i32
    return %c0_i32, %arg0 : i32, i32
  }
  func.func @transform_1(%arg0: i32) -> (i32, i32) {
    %c0_i32 = arith.constant 0 : i32
    %c0_i32_0 = arith.constant 0 : i32
    %c0_i32_1 = arith.constant 0 : i32
    return %c0_i32, %c0_i32_0 : i32, i32
  }
  func.func @transform_2(%arg0: i32) -> (i32, i32) {
    %c0_i32 = arith.constant 0 : i32
    %c0_i32_0 = arith.constant 0 : i32
    %c0_i32_1 = arith.constant 0 : i32
    return %c0_i32, %c0_i32_0 : i32, i32
  }
}

</mosaic_0001>

<llo_original>
// kernel: model_forward.2
$region0: #{model_forward.2}
  #allocation0 [shape = 'u32[]', space=smem, size = 0x4, offset = 0x4, fixed_abs, tag = 'smem constant byte address 0x4 - core index']
  #allocation1 [shape = 'u32[72,128]{1,0:T(1,128)}', space=vmem, size = 0x9000, scoped, tag = 'internal scratch']
  #allocation2 [shape = 'f32[4,1]{1,0:T(4,128)}', space=vmem, size = 0x800, scoped, tag = 'scratch operand']
  #allocation3 [shape = 'f32[4,1]{1,0:T(4,128)}', space=vmem, size = 0x800, scoped, tag = 'scratch operand']
  %s0 = inlined_call_operand.vmem [shape: f32[4,256], index: 0, kind: input, shape index: {}]
  %s1 = inlined_call_operand.vmem [shape: f32[4,4], index: 1, kind: input, shape index: {}]
  %s2 = inlined_call_operand.vmem [shape: f32[4,2], index: 2, kind: output, shape index: {}]
  %s3 = sld [smem:[#allocation0]]
  $region26: #{model_forward.2} parent=0
    _
  %s5 = ssub.s32 1, %s3
  %s6 = scalar_select 0, %s5, %s3
  // Predicated region
  $region2: #{model_forward.2} parent=0 // pred_check
    _
  $region3: #{model_forward.2} parent=0 // pred_check_branch
    %8 = sbr.rel (0) target = $region5
  $region4: #{model_forward.2} parent=0 // pred_region
    _
  $region5: #{model_forward.2} parent=0 // pred_fallthru
    _
  // Predicated region
  $region6: #{model_forward.2} parent=0 // pred_check
    _
  $region7: #{model_forward.2} parent=0 // pred_check_branch
    %10 = sbr.rel (0) target = $region9
  $region8: #{model_forward.2} parent=0 // pred_region
    _
  $region9: #{model_forward.2} parent=0 // pred_fallthru
    _
  %p11 = scmp.eq.s32.totalorder 0, 0
  // Predicated region
  $region10: #{model_forward.2} parent=0 // pred_check
    %p12 = pneg %p11
  $region11: #{model_forward.2} parent=0 // pred_check_branch
    %14 = sbr.rel (%p12) target = $region13
  $region12: #{model_forward.2} parent=0 // pred_region
    %vm15 = vcmask 3072
    %16 = vst.msk [vmem:[#allocation2] sm:$0xf] %vm15, 0.0
    %17 = vst.msk [vmem:[#allocation3] sm:$0xf] %vm15, 0.0
  $region13: #{model_forward.2} parent=0 // pred_fallthru
    _
  %v18 = vld [vmem:[%s1] sm:$0xf]
  %v19 = vld [vmem:[%s0] sm:$0xff]
  %21 = vset.pattern.permute.xlu0 0
  %22 = vperm.xlu0 %21, %v18
  %v23 = vpop.permute.xlu0 %22
  %v26 = vperm.slane %v19, 0
  %v27 = vperm.slane %v19, 4
  %v30 = vperm.slane %v26, 0
  %v31 = vperm.slane %v27, 0
  %v32 = vmul.f32 %v23, %v30
  %v33 = vmul.f32 %v23, %v31
  %34 = vset.pattern.permute.xlu0 1
  %35 = vperm.xlu0 %34, %v18
  %v36 = vpop.permute.xlu0 %35
  %v38 = vperm.slane %v19, 1
  %v39 = vperm.slane %v19, 5
  %v42 = vperm.slane %v38, 1
  %v43 = vperm.slane %v39, 1
  %v44 = vmul.f32 %v36, %v42
  %v45 = vmul.f32 %v36, %v43
  %v46 = vadd.f32 %v32, %v44
  %v47 = vadd.f32 %v33, %v45
  %v48 = vperm.slane %v19, 2
  %v49 = vperm.slane %v19, 6
  %v52 = vperm.slane %v48, 2
  %v53 = vperm.slane %v49, 2
  %v54 = vmul.f32 %v23, %v52
  %v55 = vmul.f32 %v23, %v53
  %v56 = vperm.slane %v19, 3
  %v57 = vperm.slane %v19, 7
  %v60 = vperm.slane %v56, 3
  %v61 = vperm.slane %v57, 3
  %v62 = vmul.f32 %v36, %v60
  %v63 = vmul.f32 %v36, %v61
  %v64 = vadd.f32 %v54, %v62
  %v65 = vadd.f32 %v55, %v63
  %v66 = vmul.f32 %v46, %v46
  %v67 = vmul.f32 %v47, %v47
  %v68 = vadd.f32 %v46, %v64
  %v69 = vadd.f32 %v47, %v65
  %v70 = vmul.f32 %v64, %v64
  %v71 = vmul.f32 %v65, %v65
  %v72 = vadd.f32 %v66, %v70
  %v73 = vadd.f32 %v67, %v71
  %v74 = vld [vmem:[#allocation2] sm:$0xf]
  %vm75 = vcmask 1043456
  %v76 = vsel %vm75, %v68, 0.0
  %v77 = vsel %vm75, %v69, 0.0
  %v78 = vadd.f32 %v76, %v77
  %79 = vadd.xlane.f32.xlu0 %v78
  %v80 = vpop.xlane.xlu0 %79
  %v81 = vadd.f32 %v74, %v80
  %vm82 = vcmask 3072
  %83 = vst.msk [vmem:[#allocation2] sm:$0xf] %vm82, %v81
  %v84 = vld [vmem:[#allocation3] sm:$0xf]
  %v85 = vsel %vm75, %v72, 0.0
  %v86 = vsel %vm75, %v73, 0.0
  %v87 = vadd.f32 %v85, %v86
  %88 = vadd.xlane.f32.xlu0 %v87
  %v89 = vpop.xlane.xlu0 %88
  %v90 = vadd.f32 %v84, %v89
  %91 = vst.msk [vmem:[#allocation3] sm:$0xf] %vm82, %v90
  // Predicated region
  $region14: #{model_forward.2} parent=0 // pred_check
    %p92 = pneg %p11
  $region15: #{model_forward.2} parent=0 // pred_check_branch
    %94 = sbr.rel (%p92) target = $region17
  $region16: #{model_forward.2} parent=0 // pred_region
    %v95 = vld [vmem:[#allocation2] sm:$0xf]
    %v96 = vmul.f32 %v95, 0.001953125
    %v97 = vld [vmem:[#allocation3] sm:$0xf]
    %v98 = vmul.f32 %v97, 0.001953125
    %v99 = vmul.f32 %v96, %v96
    %v100 = vsub.f32 %v98, %v99
    %v101 = vmax.f32 %v100, 0.0
    %v102 = vadd.f32 %v101, 1e-05
    %v103 = vrsqrt.pop %v102
    %v104 = vmul.f32 %v103, %v102
    %v105 = vmul.f32 %v104, %v103
    %v106 = vmul.f32 0.5, %v105
    %v107 = vsub.f32 1.5, %v106
    %v108 = vmul.f32 %v103, %v107
    %vm109 = vweird.f32 %v102
    %vm110 = vweird.f32 %v103
    %vm111 = vmor %vm109, %vm110
    %v112 = vsel %vm111, %v103, %v108
    %114 = vrot.lane.b32.xlu0 %v112, 2
    %v115 = vpop.permute.xlu0 %114
    %v117 = vmul.f32 %v18, %v115
    %v118 = vmul.f32 %v117, 0.5
    %120 = vrot.lane.b32.xlu0 %v117, 126
    %v121 = vpop.permute.xlu0 %120
    %v123 = vmul.f32 %v96, %v121
    %125 = vrot.lane.b32.xlu0 %v123, 3
    %v126 = vpop.permute.xlu0 %125
    %v128 = vsub.f32 %v18, %v126
    %v129 = vmul.f32 %v128, 0.5
    %131 = vrot.lane.b32.xlu0 %v118, 126
    %v132 = vpop.permute.xlu0 %131
    %135 = vrot.lane.b32.xlu0 %v129, 126
    %v136 = vpop.permute.xlu0 %135
    %vm138 = vcmask 7168
    %v139 = vsel %vm138, %v132, %v136
    %vm140 = vcmask 11264
    %141 = vst.msk [vmem:[%s2] sm:$0xf] %vm140, %v139
  $region17: #{model_forward.2} parent=0 // pred_fallthru
    _
  // Predicated region
  $region18: #{model_forward.2} parent=0 // pred_check
    _
  $region19: #{model_forward.2} parent=0 // pred_check_branch
    %143 = sbr.rel (0) target = $region21
  $region20: #{model_forward.2} parent=0 // pred_region
    _
  $region21: #{model_forward.2} parent=0 // pred_fallthru
    _
  // Predicated region
  $region22: #{model_forward.2} parent=0 // pred_check
    _
  $region23: #{model_forward.2} parent=0 // pred_check_branch
    %145 = sbr.rel (0) target = $region25
  $region24: #{model_forward.2} parent=0 // pred_region
    _
  $region25: #{model_forward.2} parent=0 // pred_fallthru
    _

// kernel: model_forward.3
$region0: #{model_forward.3}
  #allocation0 [shape = 'u32[]', space=smem, size = 0x4, offset = 0x4, fixed_abs, tag = 'smem constant byte address 0x4 - core index']
  #allocation1 [shape = 'u32[72,128]{1,0:T(1,128)}', space=vmem, size = 0x9000, scoped, tag = 'internal scratch']
  %s0 = inlined_call_operand.vmem [shape: f32[4,256], index: 0, kind: input, shape index: {}]
  %s1 = inlined_call_operand.vmem [shape: f32[4,4], index: 1, kind: input, shape index: {}]
  %s2 = inlined_call_operand.vmem [shape: f32[4,2], index: 2, kind: input, shape index: {}]
  %s3 = inlined_call_operand.vmem [shape: f32[8,256], index: 3, kind: output, shape index: {}]
  %s4 = sld [smem:[#allocation0]]
  $region22: #{model_forward.3} parent=0
    _
  %s6 = ssub.s32 1, %s4
  %s7 = scalar_select 0, %s6, %s4
  // Predicated region
  $region2: #{model_forward.3} parent=0 // pred_check
    _
  $region3: #{model_forward.3} parent=0 // pred_check_branch
    %9 = sbr.rel (0) target = $region5
  $region4: #{model_forward.3} parent=0 // pred_region
    _
  $region5: #{model_forward.3} parent=0 // pred_fallthru
    _
  // Predicated region
  $region6: #{model_forward.3} parent=0 // pred_check
    _
  $region7: #{model_forward.3} parent=0 // pred_check_branch
    %11 = sbr.rel (0) target = $region9
  $region8: #{model_forward.3} parent=0 // pred_region
    _
  $region9: #{model_forward.3} parent=0 // pred_fallthru
    _
  // Predicated region
  $region10: #{model_forward.3} parent=0 // pred_check
    _
  $region11: #{model_forward.3} parent=0 // pred_check_branch
    %13 = sbr.rel (0) target = $region13
  $region12: #{model_forward.3} parent=0 // pred_region
    _
  $region13: #{model_forward.3} parent=0 // pred_fallthru
    _
  %v14 = vld [vmem:[%s1] sm:$0xf]
  %v15 = vld [vmem:[%s2] sm:$0xf]
  %v16 = vld [vmem:[%s0] sm:$0xff]
  %18 = vset.pattern.permute.xlu0 0
  %19 = vperm.xlu0 %18, %v14
  %v20 = vpop.permute.xlu0 %19
  %v23 = vperm.slane %v16, 0
  %v24 = vperm.slane %v16, 4
  %v27 = vperm.slane %v23, 0
  %v28 = vperm.slane %v24, 0
  %v29 = vmul.f32 %v20, %v27
  %v30 = vmul.f32 %v20, %v28
  %31 = vset.pattern.permute.xlu0 1
  %32 = vperm.xlu0 %31, %v14
  %v33 = vpop.permute.xlu0 %32
  %v35 = vperm.slane %v16, 1
  %v36 = vperm.slane %v16, 5
  %v39 = vperm.slane %v35, 1
  %v40 = vperm.slane %v36, 1
  %v41 = vmul.f32 %v33, %v39
  %v42 = vmul.f32 %v33, %v40
  %v43 = vadd.f32 %v29, %v41
  %v44 = vadd.f32 %v30, %v42
  %v45 = vperm.slane %v16, 2
  %v46 = vperm.slane %v16, 6
  %v49 = vperm.slane %v45, 2
  %v50 = vperm.slane %v46, 2
  %v51 = vmul.f32 %v20, %v49
  %v52 = vmul.f32 %v20, %v50
  %v53 = vperm.slane %v16, 3
  %v54 = vperm.slane %v16, 7
  %v57 = vperm.slane %v53, 3
  %v58 = vperm.slane %v54, 3
  %v59 = vmul.f32 %v33, %v57
  %v60 = vmul.f32 %v33, %v58
  %v61 = vadd.f32 %v51, %v59
  %v62 = vadd.f32 %v52, %v60
  %64 = vset.pattern.permute.xlu0 0
  %65 = vperm.xlu0 %64, %v15
  %v66 = vpop.permute.xlu0 %65
  %v68 = vmul.f32 %v43, %v66
  %v69 = vmul.f32 %v44, %v66
  %70 = vset.pattern.permute.xlu0 1
  %71 = vperm.xlu0 %70, %v15
  %v72 = vpop.permute.xlu0 %71
  %v74 = vadd.f32 %v68, %v72
  %v75 = vadd.f32 %v69, %v72
  %v76 = vtanh.pop %v74
  %v77 = vtanh.pop %v75
  %v78 = vmul.f32 %v76, 0.5
  %v79 = vmul.f32 %v77, 0.5
  %v80 = vadd.f32 %v78, 0.5
  %v81 = vadd.f32 %v79, 0.5
  %82 = vst [vmem:[%s3] sm:$0xf] %v80
  %83 = vst [vmem:[%s3 + $0x8] sm:$0xf] %v81
  %v84 = vmul.f32 %v61, %v66
  %v85 = vmul.f32 %v62, %v66
  %v86 = vadd.f32 %v84, %v72
  %v87 = vadd.f32 %v85, %v72
  %v88 = vtanh.pop %v86
  %v89 = vtanh.pop %v87
  %v90 = vmul.f32 %v88, 0.5
  %v91 = vmul.f32 %v89, 0.5
  %v92 = vadd.f32 %v90, 0.5
  %v93 = vadd.f32 %v91, 0.5
  %v96 = vrot.slane %v92, 4
  %v97 = vrot.slane %v93, 4
  %100 = vst [vmem:[%s3] sm:$0xf0] %v96
  %101 = vst [vmem:[%s3 + $0x8] sm:$0xf0] %v97
  // Predicated region
  $region14: #{model_forward.3} parent=0 // pred_check
    _
  $region15: #{model_forward.3} parent=0 // pred_check_branch
    %103 = sbr.rel (0) target = $region17
  $region16: #{model_forward.3} parent=0 // pred_region
    _
  $region17: #{model_forward.3} parent=0 // pred_fallthru
    _
  // Predicated region
  $region18: #{model_forward.3} parent=0 // pred_check
    _
  $region19: #{model_forward.3} parent=0 // pred_check_branch
    %105 = sbr.rel (0) target = $region21
  $region20: #{model_forward.3} parent=0 // pred_region
    _
  $region21: #{model_forward.3} parent=0 // pred_fallthru
    _

</llo_original>
